<compile_context>
chip_gen: v7x
topology: tpu7x:2x2x1
jax: 0.10.0
libtpu: 0.0.40
codegen_flags: <defaults>
</compile_context>

<pallas_src>
import jax
import jax.numpy as jnp
from jax import lax
from jax.experimental import pallas as pl
from jax.experimental.pallas import tpu as pltpu


# ----------------------------------------------------------------------------
# Static layout constants
# ----------------------------------------------------------------------------
INPUT_SIZE = 7 * 7 * 3          # 147
HIDDEN = 64
H_PAD = 128                     # padded hidden / head lane width

# Packed parameter slab [P_ROWS, 128] (all bias rows 8-aligned):
#   rows [  0, 152): W1   (rows 0..146 real, rest zero)          [147 -> 64]
#   rows [152, 280): W2   padded to [128, 128]                   [ 64 -> 64]
#   rows [280, 408): W_head^T  (row 0 = ext, row 1 = int)        [heads, hidden]
#   row   408      : b1   (cols 0..63 real)
#   row   416      : b2
#   rows [424, 432): head bias column (col 0: row 0 = b_ext, row 1 = b_int)
W1_R0 = 0
W1_ROWS = ((INPUT_SIZE + 7) // 8) * 8         # 152
W2_R0 = W1_R0 + W1_ROWS                       # 152
WH_R0 = W2_R0 + H_PAD                         # 280
B1_R = WH_R0 + H_PAD                          # 408
B2_R = B1_R + 8                               # 416
BH_R = B2_R + 8                               # 424
P_ROWS = BH_R + 8                             # 432

MAX_BATCH_TILE = 2048           # ~6-7 MiB VMEM footprint: safe on v5e/v6e/v7x


# ----------------------------------------------------------------------------
# Pallas kernel: whole MLP hot path on one batch tile.
# ----------------------------------------------------------------------------
def _critic_kernel(x_ref, p_ref, o_ref):
    x = x_ref[...]                                                  # [bt, 147]

    # fc layer 1: Linear(147->64) + ReLU (hidden padded to 128; pads are zero)
    h = jnp.dot(x, p_ref[W1_R0:W1_R0 + INPUT_SIZE, :],
                preferred_element_type=jnp.float32)
    h = jnp.maximum(h + p_ref[B1_R:B1_R + 1, :], 0.0)               # [bt, 128]

    # fc layer 2: Linear(64->64) + ReLU
    h = jnp.dot(h, p_ref[W2_R0:W2_R0 + H_PAD, :],
                preferred_element_type=jnp.float32)
    h = jnp.maximum(h + p_ref[B2_R:B2_R + 1, :], 0.0)               # [bt, 128]

    # Fused critic heads, emitted transposed (lane-dense over batch):
    #   vt[head, b] = sum_hidden W_head^T[head, hidden] * h[b, hidden]
    vt = lax.dot_general(p_ref[WH_R0:WH_R0 + H_PAD, :], h,
                         (((1,), (1,)), ((), ())),
                         preferred_element_type=jnp.float32)        # [128, bt]

    # Keep only 8 head rows (row 0 = value_ext, row 1 = value_int, rest zero)
    # and add the head-bias column.
    o_ref[...] = vt[0:8, :] + p_ref[BH_R:BH_R + 8, 0:1]             # [8, bt]


# ----------------------------------------------------------------------------
# Wrapper
# ----------------------------------------------------------------------------
def _batch_tile(batch):
    if batch <= 128:
        # Single tile: block dims equal the full array dims (legal for any B).
        return batch
    # Multi-tile: tile must be a multiple of 128 (lane-dense transposed output,
    # 8-aligned x sublanes).  Aim for >= 2 tiles so both v7x TensorCores work.
    half = ((-(-batch // 2)) + 127) // 128 * 128
    return min(MAX_BATCH_TILE, half)


def critic_model_rapid_forward(image, packed_params):
    """image: [B, 7, 7, 3] float32. Returns value_ext: [B] (empty-memory path)."""
    B = image.shape[0]
    x = image.reshape(B, -1).astype(jnp.float32)      # [B, 147] -- no HBM padding

    bt = _batch_tile(B)
    n_tiles = pl.cdiv(B, bt)
    # Note: a partial final batch tile is handled by Pallas (out-of-range rows
    # read unspecified data, their outputs are masked on store); nothing
    # reduces over the batch, so this is safe.

    out = pl.pallas_call(
        _critic_kernel,
        out_shape=jax.ShapeDtypeStruct((8, B), jnp.float32),
        grid_spec=pltpu.PrefetchScalarGridSpec(
            num_scalar_prefetch=0,
            grid=(n_tiles,),
            in_specs=[
                pl.BlockSpec((bt, INPUT_SIZE), lambda i: (i, 0)),    # raw x tile
                pl.BlockSpec((P_ROWS, H_PAD), lambda i: (0, 0)),     # resident slab
            ],
            out_specs=pl.BlockSpec((8, bt), lambda i: (0, i)),       # [8, bt] block
        ),
        compiler_params=pltpu.CompilerParams(
            dimension_semantics=("parallel",),
            vmem_limit_bytes=32 * 1024 * 1024,
        ),
        cost_estimate=pl.CostEstimate(
            flops=2 * B * (INPUT_SIZE * HIDDEN + HIDDEN * HIDDEN + HIDDEN * 2),
            transcendentals=0,
            bytes_accessed=(B * INPUT_SIZE + P_ROWS * H_PAD + 8 * B) * 4,
        ),
    )(x, packed_params)

    # Row 0 = value_ext; row 1 (value_int) is discarded, mirroring the
    # PyTorch forward's empty-memory return path.
    return out[0, :B]


# ----------------------------------------------------------------------------
# Parameter construction mirroring the module __init__:
#   fc linears: orthogonal(gain=calculate_gain('relu')=sqrt(2)), bias = 0
#   critic heads: orthogonal(gain=1), bias = 0
# Raw weights stored as [in, out] (transpose of nn.Linear's [out, in]).
# ----------------------------------------------------------------------------
def make_params(key):
    relu_gain = jnp.sqrt(2.0)
    k1, k2, k3, k4 = jax.random.split(key, 4)
    ortho = jax.nn.initializers.orthogonal
    w1 = ortho(scale=relu_gain)(k1, (HIDDEN, INPUT_SIZE), jnp.float32).T   # [147, 64]
    w2 = ortho(scale=relu_gain)(k2, (HIDDEN, HIDDEN), jnp.float32).T       # [64, 64]
    w_ext = ortho(scale=1.0)(k3, (1, HIDDEN), jnp.float32).T               # [64, 1]
    w_int = ortho(scale=1.0)(k4, (1, HIDDEN), jnp.float32).T               # [64, 1]
    return {
        "w1": w1, "b1": jnp.zeros((HIDDEN,), jnp.float32),
        "w2": w2, "b2": jnp.zeros((HIDDEN,), jnp.float32),
        "w_ext": w_ext, "b_ext": jnp.zeros((1,), jnp.float32),
        "w_int": w_int, "b_int": jnp.zeros((1,), jnp.float32),
    }


def pack_params(p):
    """Pack all weights/biases into one zero-padded f32 slab [P_ROWS, 128].

    The zero initialization is load-bearing: all padded hidden columns / head
    rows must stay zero for the padded-width math to equal the 64-wide model.
    """
    slab = jnp.zeros((P_ROWS, H_PAD), jnp.float32)
    slab = slab.at[W1_R0:W1_R0 + INPUT_SIZE, 0:HIDDEN].set(p["w1"])
    slab = slab.at[W2_R0:W2_R0 + HIDDEN, 0:HIDDEN].set(p["w2"])
    slab = slab.at[WH_R0 + 0, 0:HIDDEN].set(p["w_ext"][:, 0])   # W_head^T row 0 (ext)
    slab = slab.at[WH_R0 + 1, 0:HIDDEN].set(p["w_int"][:, 0])   # W_head^T row 1 (int)
    slab = slab.at[B1_R, 0:HIDDEN].set(p["b1"])
    slab = slab.at[B2_R, 0:HIDDEN].set(p["b2"])
    slab = slab.at[BH_R + 0, 0].set(p["b_ext"][0])              # head-bias column
    slab = slab.at[BH_R + 1, 0].set(p["b_int"][0])
    return slab


# ----------------------------------------------------------------------------
# Pure-JAX reference for correctness.
# ----------------------------------------------------------------------------
def reference_forward(image, p):
    x = image.reshape(image.shape[0], -1)
    h = jnp.maximum(x @ p["w1"] + p["b1"], 0.0)
    h = jnp.maximum(h @ p["w2"] + p["b2"], 0.0)
    return (h @ p["w_ext"] + p["b_ext"])[:, 0]


if __name__ == "__main__":
    key = jax.random.PRNGKey(0)
    k_param, k_obs = jax.random.split(key)

    params = make_params(k_param)
    packed = pack_params(params)

    # Small deterministic "observation image": batch=2, 7x7x3.
    B = 2
    image = jax.random.uniform(k_obs, (B, 7, 7, 3), dtype=jnp.float32)

    value_ext = jax.jit(critic_model_rapid_forward)(image, packed)
    value_ext = jax.block_until_ready(value_ext)

    ref = reference_forward(image, params)
    assert value_ext.shape == (B,), value_ext.shape
    assert jnp.allclose(value_ext, ref, atol=1e-4, rtol=1e-4), (value_ext, ref)

    print("KERNEL_OK")
</pallas_src>

<mosaic_0001>
module attributes {stable_mosaic.version = 11 : i64} {
  func.func @_critic_kernel(%arg0: i32, %arg1: memref<2x147xf32, #tpu.memory_space<vmem>>, %arg2: memref<432x128xf32, #tpu.memory_space<vmem>>, %arg3: memref<8x2xf32, #tpu.memory_space<vmem>>) attributes {dimension_semantics = [#tpu.dimension_semantics<parallel>], iteration_bounds = array<i64: 1>, scalar_prefetch = 0 : i64, scratch_operands = 0 : i64, tpu.core_type = #tpu.core_type<tc>, window_params = [{transform_indices = @transform_0, window_bounds = array<i64: 2, 147>}, {pipeline_mode = #tpu.pipeline_mode<synchronous>, transform_indices = @transform_1, window_bounds = array<i64: 432, 128>}, {transform_indices = @transform_2, window_bounds = array<i64: 8, 2>}]} {
    %c0 = arith.constant 0 : index
    %c0_0 = arith.constant 0 : index
    %0 = vector.load %arg1[%c0, %c0_0] : memref<2x147xf32, #tpu.memory_space<vmem>>, vector<2x147xf32>
    %c0_1 = arith.constant 0 : index
    %c0_2 = arith.constant 0 : index
    %1 = vector.load %arg2[%c0_1, %c0_2] : memref<432x128xf32, #tpu.memory_space<vmem>>, vector<147x128xf32>
    %cst = arith.constant dense<0.000000e+00> : vector<2x128xf32>
    %2 = tpu.matmul %0, %1, %cst {dimension_numbers = #tpu.dot_dimension_numbers<[1], [0], [0], [1], [0, 0, 1, 1], [], []>} : vector<2x147xf32>, vector<147x128xf32>, vector<2x128xf32> -> vector<2x128xf32>
    %c408 = arith.constant 408 : index
    %c0_3 = arith.constant 0 : index
    %3 = vector.load %arg2[%c408, %c0_3] : memref<432x128xf32, #tpu.memory_space<vmem>>, vector<1x128xf32>
    %4 = vector.broadcast %3 : vector<1x128xf32> to vector<2x128xf32>
    %5 = arith.addf %2, %4 : vector<2x128xf32>
    %cst_4 = arith.constant 0.000000e+00 : f32
    %6 = vector.broadcast %cst_4 : f32 to vector<2x128xf32>
    %7 = arith.maximumf %5, %6 : vector<2x128xf32>
    %c152 = arith.constant 152 : index
    %c0_5 = arith.constant 0 : index
    %8 = vector.load %arg2[%c152, %c0_5] : memref<432x128xf32, #tpu.memory_space<vmem>>, vector<128x128xf32>
    %cst_6 = arith.constant dense<0.000000e+00> : vector<2x128xf32>
    %9 = tpu.matmul %7, %8, %cst_6 {dimension_numbers = #tpu.dot_dimension_numbers<[1], [0], [0], [1], [0, 0, 1, 1], [], []>} : vector<2x128xf32>, vector<128x128xf32>, vector<2x128xf32> -> vector<2x128xf32>
    %c416 = arith.constant 416 : index
    %c0_7 = arith.constant 0 : index
    %10 = vector.load %arg2[%c416, %c0_7] : memref<432x128xf32, #tpu.memory_space<vmem>>, vector<1x128xf32>
    %11 = vector.broadcast %10 : vector<1x128xf32> to vector<2x128xf32>
    %12 = arith.addf %9, %11 : vector<2x128xf32>
    %cst_8 = arith.constant 0.000000e+00 : f32
    %13 = vector.broadcast %cst_8 : f32 to vector<2x128xf32>
    %14 = arith.maximumf %12, %13 : vector<2x128xf32>
    %c280 = arith.constant 280 : index
    %c0_9 = arith.constant 0 : index
    %15 = vector.load %arg2[%c280, %c0_9] : memref<432x128xf32, #tpu.memory_space<vmem>>, vector<128x128xf32>
    %cst_10 = arith.constant dense<0.000000e+00> : vector<128x2xf32>
    %16 = tpu.matmul %15, %14, %cst_10 {dimension_numbers = #tpu.dot_dimension_numbers<[1], [1], [0], [0], [0, 0, 1, 0], [], []>} : vector<128x128xf32>, vector<2x128xf32>, vector<128x2xf32> -> vector<128x2xf32>
    %17 = vector.extract_strided_slice %16 {offsets = [0, 0], sizes = [8, 2], strides = [1, 1]} : vector<128x2xf32> to vector<8x2xf32>
    %c424 = arith.constant 424 : index
    %c0_11 = arith.constant 0 : index
    %18 = vector.load %arg2[%c424, %c0_11] : memref<432x128xf32, #tpu.memory_space<vmem>>, vector<8x1xf32>
    %19 = vector.broadcast %18 : vector<8x1xf32> to vector<8x2xf32>
    %20 = arith.addf %17, %19 : vector<8x2xf32>
    %c0_12 = arith.constant 0 : index
    %c0_13 = arith.constant 0 : index
    %21 = vector.load %arg3[%c0_12, %c0_13] : memref<8x2xf32, #tpu.memory_space<vmem>>, vector<8x2xf32>
    tpu.vector_store %arg3[%c0_12, %c0_13], %20 {strides = array<i32>} : memref<8x2xf32, #tpu.memory_space<vmem>>, vector<8x2xf32>,
    return
  }
  func.func @transform_0(%arg0: i32) -> (i32, i32) {
    %c0_i32 = arith.constant 0 : i32
    %c0_i32_0 = arith.constant 0 : i32
    return %arg0, %c0_i32 : i32, i32
  }
  func.func @transform_1(%arg0: i32) -> (i32, i32) {
    %c0_i32 = arith.constant 0 : i32
    %c0_i32_0 = arith.constant 0 : i32
    %c0_i32_1 = arith.constant 0 : i32
    return %c0_i32, %c0_i32_0 : i32, i32
  }
  func.func @transform_2(%arg0: i32) -> (i32, i32) {
    %c0_i32 = arith.constant 0 : i32
    %c0_i32_0 = arith.constant 0 : i32
    return %c0_i32, %arg0 : i32, i32
  }
}

</mosaic_0001>

<llo_original>
// kernel: critic_model_rapid_forward.1
$region0: #{critic_model_rapid_forward.1}
  #allocation0 [shape = 'u32[]', space=smem, size = 0x4, offset = 0x4, fixed_abs, tag = 'smem constant byte address 0x4 - core index']
  #allocation1 [shape = 'u32[144,128]{1,0:T(1,128)}', space=vmem, size = 0x12000, scoped, tag = 'internal scratch']
  %s0 = inlined_call_operand.vmem [shape: f32[2,147], index: 0, kind: input, shape index: {}]
  %s1 = inlined_call_operand.hbm [shape: f32[432,128], index: 1, kind: input, shape index: {}]
  %s2 = inlined_call_operand.vmem [shape: f32[8,2], index: 2, kind: output, shape index: {}]
  %s3 = sld [smem:[#allocation0]]
  $region22: #{critic_model_rapid_forward.1} parent=0
    _
  %s5 = ssub.s32 1, %s3
  %s6 = scalar_select 0, %s5, %s3
  $region1: #{critic_model_rapid_forward.1} parent=0
    #allocation2 [shape = 'u8[221184]{0}', space=vmem, size = 0x36000, scoped, tag = 'input window, operand 1, single buffered']
    #allocation3 [shape = 's32[1]{0}', space=sflag, size = 0x4, scoped, tag = 'scoped memory for critic_model_rapid_forward.1']
    %7 = vsyncpa [#allocation3], 0
    // Predicated region
    $region2: #{critic_model_rapid_forward.1} parent=1 // pred_check
      _
    $region3: #{critic_model_rapid_forward.1} parent=1 // pred_check_branch
      %9 = sbr.rel (0) target = $region5
    $region4: #{critic_model_rapid_forward.1} parent=1 // pred_region
      _
    $region5: #{critic_model_rapid_forward.1} parent=1 // pred_fallthru
      _
    // Predicated region
    $region6: #{critic_model_rapid_forward.1} parent=1 // pred_check
      _
    $region7: #{critic_model_rapid_forward.1} parent=1 // pred_check_branch
      %11 = sbr.rel (0) target = $region9
    $region8: #{critic_model_rapid_forward.1} parent=1 // pred_region
      %s13 = ssub.s32 6912, 6912
      %14 = vsyncadd [#allocation3], %s13
      %s15 = sshll.u32 [#allocation2], 4
      %s16 = int_to_ptr.vmem [resolvable:$true] %s15
      %21 = dma.hbm_to_vmem [thread:$0]  %s1, 6912, %s16, [#allocation3], 128, 128, 8
    $region9: #{critic_model_rapid_forward.1} parent=1 // pred_fallthru
      _
    // Predicated region
    $region10: #{critic_model_rapid_forward.1} parent=1 // pred_check
      _
    $region11: #{critic_model_rapid_forward.1} parent=1 // pred_check_branch
      %23 = sbr.rel (0) target = $region13
    $region12: #{critic_model_rapid_forward.1} parent=1 // pred_region
      %24 = dma.done [#allocation3], 6912
    $region13: #{critic_model_rapid_forward.1} parent=1 // pred_fallthru
      _
    %v25 = vld [vmem:[%s0] sm:$0xf]
    %v26 = vld [vmem:[#allocation2] sm:$0xff]
    %v27 = vld [vmem:[#allocation2 + $0x8] sm:$0xff]
    %v28 = vld [vmem:[#allocation2 + $0x10] sm:$0xff]
    %v29 = vld [vmem:[#allocation2 + $0x18] sm:$0xff]
    %v30 = vld [vmem:[#allocation2 + $0x20] sm:$0xff]
    %v31 = vld [vmem:[#allocation2 + $0x28] sm:$0xff]
    %v32 = vld [vmem:[#allocation2 + $0x30] sm:$0xff]
    %v33 = vld [vmem:[#allocation2 + $0x38] sm:$0xff]
    %v34 = vld [vmem:[#allocation2 + $0x40] sm:$0xff]
    %v35 = vld [vmem:[#allocation2 + $0x48] sm:$0xff]
    %v36 = vld [vmem:[#allocation2 + $0x50] sm:$0xff]
    %v37 = vld [vmem:[#allocation2 + $0x58] sm:$0xff]
    %v38 = vld [vmem:[#allocation2 + $0x60] sm:$0xff]
    %v39 = vld [vmem:[#allocation2 + $0x68] sm:$0xff]
    %v40 = vld [vmem:[#allocation2 + $0x70] sm:$0xff]
    %v41 = vld [vmem:[#allocation2 + $0x78] sm:$0xff]
    %v42 = vld [vmem:[#allocation2 + $0x80] sm:$0xff]
    %v43 = vld [vmem:[#allocation2 + $0x88] sm:$0xff]
    %v44 = vld [vmem:[#allocation2 + $0x90] sm:$0x7]
    %v45 = vld [vmem:[#allocation2 + $0x198] sm:$0x1]
    %v46 = vlaneseq
    %v47 = vshrl.u32 %v46, 7
    %v48 = vsub.s32 0, %v47
    %v49 = vrot.slane %v45, %v48
    %v52 = vunpack.c.l.s4 1983009808
    %v53 = vunpack.c.0.s8 %v52
    %v54 = vlaneseq
    %v55 = vshrl.u32 %v54, 7
    %v56 = vsub.s32 %v53, %v55
    %v57 = vrot.slane %v25, %v56
    %v58 = vcombine.high %v57, %v57
    %vm60 = vcmask 154624
    %v61 = vsel %vm60, %v58, 0
    %vm63 = vcmask 1042432
    %v65 = vsel %vm63, %v44, 0
    %67 = vmatprep.subr.mxu0 0.0
    %68 = vmatpush1.msra.mxu0 %v26
    %69 = vmatprep.subr.mxu0 0.0
    %70 = vmatpush1.msra.mxu0 %v27
    %71 = vmatprep.subr.mxu0 0.0
    %72 = vmatpush1.msra.mxu0 %v28
    %73 = vmatprep.subr.mxu0 0.0
    %74 = vmatpush1.msra.mxu0 %v29
    %75 = vmatprep.subr.mxu0 0.0
    %76 = vmatpush1.msra.mxu0 %v30
    %77 = vmatprep.subr.mxu0 0.0
    %78 = vmatpush1.msra.mxu0 %v31
    %79 = vmatprep.subr.mxu0 0.0
    %80 = vmatpush1.msra.mxu0 %v32
    %81 = vmatprep.subr.mxu0 0.0
    %82 = vmatpush1.msra.mxu0 %v33
    %83 = vmatprep.subr.mxu0 0.0
    %84 = vmatpush1.msra.mxu0 %v34
    %85 = vmatprep.subr.mxu0 0.0
    %86 = vmatpush1.msra.mxu0 %v35
    %87 = vmatprep.subr.mxu0 0.0
    %88 = vmatpush1.msra.mxu0 %v36
    %89 = vmatprep.subr.mxu0 0.0
    %90 = vmatpush1.msra.mxu0 %v37
    %91 = vmatprep.subr.mxu0 0.0
    %92 = vmatpush1.msra.mxu0 %v38
    %93 = vmatprep.subr.mxu0 0.0
    %94 = vmatpush1.msra.mxu0 %v39
    %95 = vmatprep.subr.mxu0 0.0
    %96 = vmatpush1.msra.mxu0 %v40
    %97 = vmatprep.subr.mxu0 0.0
    %98 = vmatpush1.msra.mxu0 %v41
    %99 = vmatprep.subr.mxu0 0.0
    %100 = vmatpush1.msra.mxu0 %v42
    %101 = vmatprep.subr.mxu0 0.0
    %102 = vmatpush1.msra.mxu0 %v43
    %103 = vmatprep.subr.mxu0 0.0
    %104 = vmatpush1.msra.mxu0 %v65
    %105 = vmatprep.subr.mxu0 0.0
    %106 = vmatpush1.msra.mxu0 0.0
    %107 = vmatprep.subr.mxu0 0.0
    %108 = vmatpush1.msra.mxu0 0.0
    %109 = vmatprep.subr.mxu0 0.0
    %110 = vmatpush1.msra.mxu0 0.0
    %111 = vmatprep.subr.mxu0 0.0
    %112 = vmatpush1.msra.mxu0 0.0
    %113 = vmatprep.subr.mxu0 0.0
    %114 = vmatpush1.msra.mxu0 0.0
    %115 = vmatprep.subr.mxu0 0.0
    %116 = vmatpush1.msra.mxu0 0.0
    %117 = vmatprep.subr.mxu0 0.0
    %118 = vmatpush1.msra.mxu0 0.0
    %119 = vmatprep.subr.mxu0 0.0
    %120 = vmatpush1.msra.mxu0 0.0
    %121 = vmatprep.subr.mxu0 0.0
    %122 = vmatpush1.msra.mxu0 0.0
    %123 = vmatprep.subr.mxu0 0.0
    %124 = vmatpush1.msra.mxu0 0.0
    %125 = vmatprep.subr.mxu0 0.0
    %126 = vmatpush1.msra.mxu0 0.0
    %127 = vmatprep.subr.mxu0 0.0
    %128 = vmatpush1.msra.mxu0 0.0
    %129 = vmatprep.subr.mxu0 0.0
    %130 = vmatpush1.msra.mxu0 0.0
    %131 = vmatprep.mubr.f32.mxu0 %v61
    %132 = vmatmul.mubr.f32.gmra.mrb[0].mxu0 %v57
    %v133 = vpop.f32.mrb[0].mxu0
    %v134 = vadd.f32 %v49, %v133
    %v135 = vpop.f32.mrb[0].mxu0
    %136 = vdwg.mxu0
    %v137 = vmax.f32 %v134, 0.0
    %v138 = vld [vmem:[#allocation2 + $0x98] sm:$0xff]
    %v139 = vld [vmem:[#allocation2 + $0xa0] sm:$0xff]
    %v140 = vld [vmem:[#allocation2 + $0xa8] sm:$0xff]
    %v141 = vld [vmem:[#allocation2 + $0xb0] sm:$0xff]
    %v142 = vld [vmem:[#allocation2 + $0xb8] sm:$0xff]
    %v143 = vld [vmem:[#allocation2 + $0xc0] sm:$0xff]
    %v144 = vld [vmem:[#allocation2 + $0xc8] sm:$0xff]
    %v145 = vld [vmem:[#allocation2 + $0xd0] sm:$0xff]
    %v146 = vld [vmem:[#allocation2 + $0xd8] sm:$0xff]
    %v147 = vld [vmem:[#allocation2 + $0xe0] sm:$0xff]
    %v148 = vld [vmem:[#allocation2 + $0xe8] sm:$0xff]
    %v149 = vld [vmem:[#allocation2 + $0xf0] sm:$0xff]
    %v150 = vld [vmem:[#allocation2 + $0xf8] sm:$0xff]
    %v151 = vld [vmem:[#allocation2 + $0x100] sm:$0xff]
    %v152 = vld [vmem:[#allocation2 + $0x108] sm:$0xff]
    %v153 = vld [vmem:[#allocation2 + $0x110] sm:$0xff]
    %v154 = vld [vmem:[#allocation2 + $0x1a0] sm:$0x1]
    %v155 = vlaneseq
    %v156 = vshrl.u32 %v155, 7
    %v157 = vsub.s32 0, %v156
    %v158 = vrot.slane %v154, %v157
    %159 = vmatprep.subr.mxu0 0.0
    %160 = vmatpush1.msra.mxu0 %v138
    %161 = vmatprep.subr.mxu0 0.0
    %162 = vmatpush1.msra.mxu0 %v139
    %163 = vmatprep.subr.mxu0 0.0
    %164 = vmatpush1.msra.mxu0 %v140
    %165 = vmatprep.subr.mxu0 0.0
    %166 = vmatpush1.msra.mxu0 %v141
    %167 = vmatprep.subr.mxu0 0.0
    %168 = vmatpush1.msra.mxu0 %v142
    %169 = vmatprep.subr.mxu0 0.0
    %170 = vmatpush1.msra.mxu0 %v143
    %171 = vmatprep.subr.mxu0 0.0
    %172 = vmatpush1.msra.mxu0 %v144
    %173 = vmatprep.subr.mxu0 0.0
    %174 = vmatpush1.msra.mxu0 %v145
    %175 = vmatprep.subr.mxu0 0.0
    %176 = vmatpush1.msra.mxu0 %v146
    %177 = vmatprep.subr.mxu0 0.0
    %178 = vmatpush1.msra.mxu0 %v147
    %179 = vmatprep.subr.mxu0 0.0
    %180 = vmatpush1.msra.mxu0 %v148
    %181 = vmatprep.subr.mxu0 0.0
    %182 = vmatpush1.msra.mxu0 %v149
    %183 = vmatprep.subr.mxu0 0.0
    %184 = vmatpush1.msra.mxu0 %v150
    %185 = vmatprep.subr.mxu0 0.0
    %186 = vmatpush1.msra.mxu0 %v151
    %187 = vmatprep.subr.mxu0 0.0
    %188 = vmatpush1.msra.mxu0 %v152
    %189 = vmatprep.subr.mxu0 0.0
    %190 = vmatpush1.msra.mxu0 %v153
    %191 = vmatprep.subr.mxu0 0.0
    %192 = vmatpush1.msra.mxu0 0.0
    %193 = vmatprep.subr.mxu0 0.0
    %194 = vmatpush1.msra.mxu0 0.0
    %195 = vmatprep.subr.mxu0 0.0
    %196 = vmatpush1.msra.mxu0 0.0
    %197 = vmatprep.subr.mxu0 0.0
    %198 = vmatpush1.msra.mxu0 0.0
    %199 = vmatprep.subr.mxu0 0.0
    %200 = vmatpush1.msra.mxu0 0.0
    %201 = vmatprep.subr.mxu0 0.0
    %202 = vmatpush1.msra.mxu0 0.0
    %203 = vmatprep.subr.mxu0 0.0
    %204 = vmatpush1.msra.mxu0 0.0
    %205 = vmatprep.subr.mxu0 0.0
    %206 = vmatpush1.msra.mxu0 0.0
    %207 = vmatprep.subr.mxu0 0.0
    %208 = vmatpush1.msra.mxu0 0.0
    %209 = vmatprep.subr.mxu0 0.0
    %210 = vmatpush1.msra.mxu0 0.0
    %211 = vmatprep.subr.mxu0 0.0
    %212 = vmatpush1.msra.mxu0 0.0
    %213 = vmatprep.subr.mxu0 0.0
    %214 = vmatpush1.msra.mxu0 0.0
    %215 = vmatprep.subr.mxu0 0.0
    %216 = vmatpush1.msra.mxu0 0.0
    %217 = vmatprep.subr.mxu0 0.0
    %218 = vmatpush1.msra.mxu0 0.0
    %219 = vmatprep.subr.mxu0 0.0
    %220 = vmatpush1.msra.mxu0 0.0
    %221 = vmatprep.subr.mxu0 0.0
    %222 = vmatpush1.msra.mxu0 0.0
    %223 = vmatprep.mubr.f32.mxu0 0.0
    %224 = vmatmul.mubr.f32.gmra.mrb[0].mxu0 %v137
    %v225 = vpop.f32.mrb[0].mxu0
    %v226 = vadd.f32 %v158, %v225
    %v227 = vpop.f32.mrb[0].mxu0
    %228 = vdwg.mxu0
    %v229 = vmax.f32 %v226, 0.0
    %v230 = vld [vmem:[#allocation2 + $0x118] sm:$0xff]
    %v231 = vld [vmem:[#allocation2 + $0x120] sm:$0xff]
    %v232 = vld [vmem:[#allocation2 + $0x128] sm:$0xff]
    %v233 = vld [vmem:[#allocation2 + $0x130] sm:$0xff]
    %v234 = vld [vmem:[#allocation2 + $0x138] sm:$0xff]
    %v235 = vld [vmem:[#allocation2 + $0x140] sm:$0xff]
    %v236 = vld [vmem:[#allocation2 + $0x148] sm:$0xff]
    %v237 = vld [vmem:[#allocation2 + $0x150] sm:$0xff]
    %v238 = vld [vmem:[#allocation2 + $0x158] sm:$0xff]
    %v239 = vld [vmem:[#allocation2 + $0x160] sm:$0xff]
    %v240 = vld [vmem:[#allocation2 + $0x168] sm:$0xff]
    %v241 = vld [vmem:[#allocation2 + $0x170] sm:$0xff]
    %v242 = vld [vmem:[#allocation2 + $0x178] sm:$0xff]
    %v243 = vld [vmem:[#allocation2 + $0x180] sm:$0xff]
    %v244 = vld [vmem:[#allocation2 + $0x188] sm:$0xff]
    %v245 = vld [vmem:[#allocation2 + $0x190] sm:$0xff]
    %246 = vmatprep.subr.mxu0 0.0
    %247 = vmatpush1.xpose.msra.mxu0 %v229
    %248 = vmatprep.subr.mxu0 0.0
    %249 = vmatpush1.xpose.msra.mxu0 0.0
    %250 = vmatprep.subr.mxu0 0.0
    %251 = vmatpush1.xpose.msra.mxu0 0.0
    %252 = vmatprep.subr.mxu0 0.0
    %253 = vmatpush1.xpose.msra.mxu0 0.0
    %254 = vmatprep.subr.mxu0 0.0
    %255 = vmatpush1.xpose.msra.mxu0 0.0
    %256 = vmatprep.subr.mxu0 0.0
    %257 = vmatpush1.xpose.msra.mxu0 0.0
    %258 = vmatprep.subr.mxu0 0.0
    %259 = vmatpush1.xpose.msra.mxu0 0.0
    %260 = vmatprep.subr.mxu0 0.0
    %261 = vmatpush1.xpose.msra.mxu0 0.0
    %262 = vmatprep.subr.mxu0 0.0
    %263 = vmatpush1.xpose.msra.mxu0 0.0
    %264 = vmatprep.subr.mxu0 0.0
    %265 = vmatpush1.xpose.msra.mxu0 0.0
    %266 = vmatprep.subr.mxu0 0.0
    %267 = vmatpush1.xpose.msra.mxu0 0.0
    %268 = vmatprep.subr.mxu0 0.0
    %269 = vmatpush1.xpose.msra.mxu0 0.0
    %270 = vmatprep.subr.mxu0 0.0
    %271 = vmatpush1.xpose.msra.mxu0 0.0
    %272 = vmatprep.subr.mxu0 0.0
    %273 = vmatpush1.xpose.msra.mxu0 0.0
    %274 = vmatprep.subr.mxu0 0.0
    %275 = vmatpush1.xpose.msra.mxu0 0.0
    %276 = vmatprep.subr.mxu0 0.0
    %277 = vmatpush1.xpose.msra.mxu0 0.0
    %278 = vmatprep.subr.mxu0 0.0
    %279 = vmatpush1.xpose.msra.mxu0 0.0
    %280 = vmatprep.subr.mxu0 0.0
    %281 = vmatpush1.xpose.msra.mxu0 0.0
    %282 = vmatprep.subr.mxu0 0.0
    %283 = vmatpush1.xpose.msra.mxu0 0.0
    %284 = vmatprep.subr.mxu0 0.0
    %285 = vmatpush1.xpose.msra.mxu0 0.0
    %286 = vmatprep.subr.mxu0 0.0
    %287 = vmatpush1.xpose.msra.mxu0 0.0
    %288 = vmatprep.subr.mxu0 0.0
    %289 = vmatpush1.xpose.msra.mxu0 0.0
    %290 = vmatprep.subr.mxu0 0.0
    %291 = vmatpush1.xpose.msra.mxu0 0.0
    %292 = vmatprep.subr.mxu0 0.0
    %293 = vmatpush1.xpose.msra.mxu0 0.0
    %294 = vmatprep.subr.mxu0 0.0
    %295 = vmatpush1.xpose.msra.mxu0 0.0
    %296 = vmatprep.subr.mxu0 0.0
    %297 = vmatpush1.xpose.msra.mxu0 0.0
    %298 = vmatprep.subr.mxu0 0.0
    %299 = vmatpush1.xpose.msra.mxu0 0.0
    %300 = vmatprep.subr.mxu0 0.0
    %301 = vmatpush1.xpose.msra.mxu0 0.0
    %302 = vmatprep.subr.mxu0 0.0
    %303 = vmatpush1.xpose.msra.mxu0 0.0
    %304 = vmatprep.subr.mxu0 0.0
    %305 = vmatpush1.xpose.msra.mxu0 0.0
    %306 = vmatprep.subr.mxu0 0.0
    %307 = vmatpush1.xpose.msra.mxu0 0.0
    %308 = vmatprep.subr.mxu0 0.0
    %309 = vmatpush1.xpose.msra.mxu0 0.0
    %310 = vmatprep.mubr.f32.mxu0 0.0
    %311 = vmatmul.mubr.f32.gmra.mrb[0].mxu0 %v230
    %v312 = vpop.f32.mrb[0].mxu0
    %v313 = vadd.f32 0.0, %v312
    %v314 = vpop.f32.mrb[0].mxu0
    %315 = vmatprep.mubr.f32.mxu0 0.0
    %316 = vmatmul.mubr.f32.gmra.mrb[0].mxu0 %v231
    %v317 = vpop.f32.mrb[0].mxu0
    %v318 = vpop.f32.mrb[0].mxu0
    %319 = vmatprep.mubr.f32.mxu0 0.0
    %320 = vmatmul.mubr.f32.gmra.mrb[0].mxu0 %v232
    %v321 = vpop.f32.mrb[0].mxu0
    %v322 = vpop.f32.mrb[0].mxu0
    %323 = vmatprep.mubr.f32.mxu0 0.0
    %324 = vmatmul.mubr.f32.gmra.mrb[0].mxu0 %v233
    %v325 = vpop.f32.mrb[0].mxu0
    %v326 = vpop.f32.mrb[0].mxu0
    %327 = vmatprep.mubr.f32.mxu0 0.0
    %328 = vmatmul.mubr.f32.gmra.mrb[0].mxu0 %v234
    %v329 = vpop.f32.mrb[0].mxu0
    %v330 = vpop.f32.mrb[0].mxu0
    %331 = vmatprep.mubr.f32.mxu0 0.0
    %332 = vmatmul.mubr.f32.gmra.mrb[0].mxu0 %v235
    %v333 = vpop.f32.mrb[0].mxu0
    %v334 = vpop.f32.mrb[0].mxu0
    %335 = vmatprep.mubr.f32.mxu0 0.0
    %336 = vmatmul.mubr.f32.gmra.mrb[0].mxu0 %v236
    %v337 = vpop.f32.mrb[0].mxu0
    %v338 = vpop.f32.mrb[0].mxu0
    %339 = vmatprep.mubr.f32.mxu0 0.0
    %340 = vmatmul.mubr.f32.gmra.mrb[0].mxu0 %v237
    %v341 = vpop.f32.mrb[0].mxu0
    %v342 = vpop.f32.mrb[0].mxu0
    %343 = vmatprep.mubr.f32.mxu0 0.0
    %344 = vmatmul.mubr.f32.gmra.mrb[0].mxu0 %v238
    %v345 = vpop.f32.mrb[0].mxu0
    %v346 = vpop.f32.mrb[0].mxu0
    %347 = vmatprep.mubr.f32.mxu0 0.0
    %348 = vmatmul.mubr.f32.gmra.mrb[0].mxu0 %v239
    %v349 = vpop.f32.mrb[0].mxu0
    %v350 = vpop.f32.mrb[0].mxu0
    %351 = vmatprep.mubr.f32.mxu0 0.0
    %352 = vmatmul.mubr.f32.gmra.mrb[0].mxu0 %v240
    %v353 = vpop.f32.mrb[0].mxu0
    %v354 = vpop.f32.mrb[0].mxu0
    %355 = vmatprep.mubr.f32.mxu0 0.0
    %356 = vmatmul.mubr.f32.gmra.mrb[0].mxu0 %v241
    %v357 = vpop.f32.mrb[0].mxu0
    %v358 = vpop.f32.mrb[0].mxu0
    %359 = vmatprep.mubr.f32.mxu0 0.0
    %360 = vmatmul.mubr.f32.gmra.mrb[0].mxu0 %v242
    %v361 = vpop.f32.mrb[0].mxu0
    %v362 = vpop.f32.mrb[0].mxu0
    %363 = vmatprep.mubr.f32.mxu0 0.0
    %364 = vmatmul.mubr.f32.gmra.mrb[0].mxu0 %v243
    %v365 = vpop.f32.mrb[0].mxu0
    %v366 = vpop.f32.mrb[0].mxu0
    %367 = vmatprep.mubr.f32.mxu0 0.0
    %368 = vmatmul.mubr.f32.gmra.mrb[0].mxu0 %v244
    %v369 = vpop.f32.mrb[0].mxu0
    %v370 = vpop.f32.mrb[0].mxu0
    %371 = vmatprep.mubr.f32.mxu0 0.0
    %372 = vmatmul.mubr.f32.gmra.mrb[0].mxu0 %v245
    %v373 = vpop.f32.mrb[0].mxu0
    %v374 = vpop.f32.mrb[0].mxu0
    %375 = vdwg.mxu0
    %v376 = vld [vmem:[#allocation2 + $0x1a8] sm:$0xff]
    %378 = vset.pattern.permute.xlu0 0
    %379 = vperm.xlu0 %378, %v376
    %v380 = vpop.permute.xlu0 %379
    %v382 = vadd.f32 %v313, %v380
    %vm383 = vcmask 15360
    %384 = vst.msk [vmem:[%s2] sm:$0xff] %vm383, %v382
    // Predicated region
    $region14: #{critic_model_rapid_forward.1} parent=1 // pred_check
      _
    $region15: #{critic_model_rapid_forward.1} parent=1 // pred_check_branch
      %386 = sbr.rel (0) target = $region17
    $region16: #{critic_model_rapid_forward.1} parent=1 // pred_region
      _
    $region17: #{critic_model_rapid_forward.1} parent=1 // pred_fallthru
      _
    // Predicated region
    $region18: #{critic_model_rapid_forward.1} parent=1 // pred_check
      _
    $region19: #{critic_model_rapid_forward.1} parent=1 // pred_check_branch
      %388 = sbr.rel (0) target = $region21
    $region20: #{critic_model_rapid_forward.1} parent=1 // pred_region
      _
    $region21: #{critic_model_rapid_forward.1} parent=1 // pred_fallthru
      _
    %389 = vsyncpa [#allocation3], 1

</llo_original>
